<compile_context>
chip_gen: v5e
topology: v5e:2x2
jax: 0.10.0
libtpu: 0.0.40
codegen_flags: <defaults>
</compile_context>

<pallas_src>
import math

import jax
import jax.numpy as jnp
from jax.experimental import pallas as pl
from jax.experimental.pallas import tpu as pltpu


def _round_up(x, m):
    return ((x + m - 1) // m) * m


# ---------------------------------------------------------------------------
# Pallas kernel: fused Linear -> ReLU -> Linear -> softmax over one M tile
# ---------------------------------------------------------------------------

def _clustering_head_kernel(x_ref, w1_ref, b1_ref, w2_ref, b2_ref, o_ref):
    # layer 1: x @ W1 + b1, ReLU  (bf16 MXU operands, f32 accumulation)
    x = x_ref[...].astype(jnp.bfloat16)          # cheap VPU cast, hidden under DMA
    h = jnp.dot(x, w1_ref[...], preferred_element_type=jnp.float32) + b1_ref[...]
    h = jnp.maximum(h, 0.0)

    # layer 2: h @ W2 + b2.  Padded class lanes carry a -1e30 bias baked into
    # b2 at prepare time, so they vanish in exp() with no explicit masking.
    logits = jnp.dot(h.astype(jnp.bfloat16), w2_ref[...],
                     preferred_element_type=jnp.float32) + b2_ref[...]

    # numerically stable softmax over the lane axis; exact divide so rows sum
    # to 1 to f32 rounding (approx reciprocal was not accurate enough).
    m = jnp.max(logits, axis=-1, keepdims=True)
    e = jnp.exp(logits - m)
    probs = e / jnp.sum(e, axis=-1, keepdims=True)

    # store only the real classes (small masked store; 12.8x less HBM write
    # than the previous padded f32[., 128] block, and no wrapper slice pass).
    n_real = o_ref.shape[-1]
    o_ref[...] = probs[:, :n_real].astype(o_ref.dtype)


# ---------------------------------------------------------------------------
# One-time parameter preparation (hoisted out of the per-call forward)
# ---------------------------------------------------------------------------

def prepare_params(params, *, class_mask_value=-1e30):
    """Pad hidden/class dims to 128 lanes, cast weights to bf16, bake the
    padded-class mask into b2.  Call once; reuse the result every forward."""
    w1, b1, w2, b2 = params["w1"], params["b1"], params["w2"], params["b2"]
    D, H = w1.shape
    C = w2.shape[1]
    Hp = _round_up(H, 128)
    Cp = _round_up(C, 128)

    w1p = jnp.pad(w1, ((0, 0), (0, Hp - H))).astype(jnp.bfloat16)        # (D, Hp)
    b1p = jnp.pad(b1.reshape(1, H), ((0, 0), (0, Hp - H))).astype(jnp.float32)
    w2p = jnp.pad(w2, ((0, Hp - H), (0, Cp - C))).astype(jnp.bfloat16)   # (Hp, Cp)
    b2p = jnp.pad(b2.reshape(1, C), ((0, 0), (0, Cp - C)),
                  constant_values=class_mask_value).astype(jnp.float32)  # (1, Cp)
    return {"w1p": w1p, "b1p": b1p, "w2p": w2p, "b2p": b2p}


# ---------------------------------------------------------------------------
# Forward wrapper: one pallas_call, x streamed unpadded
# ---------------------------------------------------------------------------

def clustering_head_forward(x, prepared, *, n_clusters, max_block_m=2048):
    """probs = softmax(relu(x @ W1 + b1) @ W2 + b2, -1); x: [B, input_dim] f32."""
    w1p, b1p, w2p, b2p = (prepared["w1p"], prepared["b1p"],
                          prepared["w2p"], prepared["b2p"])
    B, D = x.shape
    Dw, Hp = w1p.shape
    Cp = w2p.shape[1]
    C = n_clusters
    assert Dw == D and C <= Cp

    # ~4 batch tiles (>=2 per TensorCore on v7x so DMA/compute still overlap),
    # multiple of 16 (bf16 sublane packing), capped so VMEM stays small.
    tm = min(max_block_m, _round_up(max(-(-B // 4), 1), 16))
    grid = (pl.cdiv(B, tm),)   # partial trailing tile handled by Pallas

    # VMEM budget: double-buffered x/out tiles + resident weights + in-kernel
    # temporaries, x2 headroom, capped at 32 MiB (safe on v7x's 64 MiB VMEM).
    vmem_bytes = (2 * tm * D * 4             # x tiles (f32, double-buffered)
                  + D * Hp * 2 + Hp * 4      # W1 (bf16) + b1 (f32)
                  + Hp * Cp * 2 + Cp * 4     # W2 (bf16) + b2 (f32)
                  + 2 * tm * C * 4           # out tiles (f32, double-buffered)
                  + tm * (Hp + 2 * Cp) * 4)  # h / logits / exp temporaries
    vmem_limit = int(min(max(2 * vmem_bytes, 4 << 20), 32 << 20))

    return pl.pallas_call(
        _clustering_head_kernel,
        out_shape=jax.ShapeDtypeStruct((B, C), jnp.float32),
        grid=grid,
        in_specs=[
            pl.BlockSpec((tm, D), lambda i: (i, 0)),    # x streams over M (f32, no copy)
            pl.BlockSpec((D, Hp), lambda i: (0, 0)),    # W1 resident
            pl.BlockSpec((1, Hp), lambda i: (0, 0)),    # b1 resident
            pl.BlockSpec((Hp, Cp), lambda i: (0, 0)),   # W2 resident
            pl.BlockSpec((1, Cp), lambda i: (0, 0)),    # b2 resident (mask baked in)
        ],
        out_specs=pl.BlockSpec((tm, C), lambda i: (i, 0)),  # only real classes written
        compiler_params=pltpu.CompilerParams(
            dimension_semantics=("parallel",),          # shard M tiles across TCs (v7x)
            vmem_limit_bytes=vmem_limit,
        ),
    )(x, w1p, b1p, w2p, b2p)


# ---------------------------------------------------------------------------
# Parameter init (PyTorch nn.Linear default init) + pure-JAX reference
# ---------------------------------------------------------------------------

def init_params(key, input_dim, hidden_dim, n_clusters):
    k1, k2, k3, k4 = jax.random.split(key, 4)

    def linear(kw, kb, fin, fout):
        bound = 1.0 / math.sqrt(fin)
        W = jax.random.uniform(kw, (fin, fout), jnp.float32, -bound, bound)
        b = jax.random.uniform(kb, (fout,), jnp.float32, -bound, bound)
        return W, b

    w1, b1 = linear(k1, k2, input_dim, hidden_dim)
    w2, b2 = linear(k3, k4, hidden_dim, n_clusters)
    return {"w1": w1, "b1": b1, "w2": w2, "b2": b2}


def clustering_head_ref(x, params):
    h = jnp.maximum(x @ params["w1"] + params["b1"], 0.0)
    logits = h @ params["w2"] + params["b2"]
    return jax.nn.softmax(logits, axis=-1)


# ---------------------------------------------------------------------------
# Main
# ---------------------------------------------------------------------------

if __name__ == "__main__":
    input_dim, hidden_dim, n_clusters = 64, 32, 10

    key = jax.random.PRNGKey(0)
    kp, kx1, kx2 = jax.random.split(key, 3)
    params = init_params(kp, input_dim, hidden_dim, n_clusters)
    prepared = prepare_params(params)   # one-time pad/cast, NOT per forward call

    fwd = jax.jit(clustering_head_forward, static_argnames=("n_clusters",))

    # small batch (single, partial tile)
    x_small = jax.random.normal(kx1, (2, input_dim), jnp.float32)
    probs_small = fwd(x_small, prepared, n_clusters=n_clusters)

    # larger batch exercising the tiled, megacore-parallel M grid
    x_big = jax.random.normal(kx2, (512, input_dim), jnp.float32)
    probs_big = fwd(x_big, prepared, n_clusters=n_clusters)

    jax.block_until_ready((probs_small, probs_big))

    for x, probs in ((x_small, probs_small), (x_big, probs_big)):
        ref = clustering_head_ref(x, params)
        assert probs.shape == (x.shape[0], n_clusters)
        assert bool(jnp.all(jnp.isfinite(probs)))
        assert bool(jnp.allclose(jnp.sum(probs, axis=-1), 1.0, atol=1e-3))
        assert bool(jnp.allclose(probs, ref, atol=2e-2, rtol=2e-2))

    print("KERNEL_OK")
</pallas_src>

<mosaic_0001>
module attributes {stable_mosaic.version = 11 : i64} {
  func.func @_clustering_head_kernel(%arg0: i32, %arg1: memref<16x64xf32, #tpu.memory_space<vmem>>, %arg2: memref<64x128xbf16, #tpu.memory_space<vmem>>, %arg3: memref<1x128xf32, #tpu.memory_space<vmem>>, %arg4: memref<128x128xbf16, #tpu.memory_space<vmem>>, %arg5: memref<1x128xf32, #tpu.memory_space<vmem>>, %arg6: memref<16x10xf32, #tpu.memory_space<vmem>>) attributes {dimension_semantics = [#tpu.dimension_semantics<parallel>], iteration_bounds = array<i64: 1>, scalar_prefetch = 0 : i64, scratch_operands = 0 : i64, tpu.core_type = #tpu.core_type<tc>, window_params = [{transform_indices = @transform_0, window_bounds = array<i64: 16, 64>}, {pipeline_mode = #tpu.pipeline_mode<synchronous>, transform_indices = @transform_1, window_bounds = array<i64: 64, 128>}, {pipeline_mode = #tpu.pipeline_mode<synchronous>, transform_indices = @transform_2, window_bounds = array<i64: 1, 128>}, {pipeline_mode = #tpu.pipeline_mode<synchronous>, transform_indices = @transform_3, window_bounds = array<i64: 128, 128>}, {pipeline_mode = #tpu.pipeline_mode<synchronous>, transform_indices = @transform_4, window_bounds = array<i64: 1, 128>}, {transform_indices = @transform_5, window_bounds = array<i64: 16, 10>}]} {
    %c0 = arith.constant 0 : index
    %c0_0 = arith.constant 0 : index
    %0 = vector.load %arg1[%c0, %c0_0] : memref<16x64xf32, #tpu.memory_space<vmem>>, vector<16x64xf32>
    %1 = arith.truncf %0 : vector<16x64xf32> to vector<16x64xbf16>
    %c0_1 = arith.constant 0 : index
    %c0_2 = arith.constant 0 : index
    %2 = vector.load %arg2[%c0_1, %c0_2] : memref<64x128xbf16, #tpu.memory_space<vmem>>, vector<64x128xbf16>
    %cst = arith.constant dense<0.000000e+00> : vector<16x128xf32>
    %3 = tpu.matmul %1, %2, %cst {dimension_numbers = #tpu.dot_dimension_numbers<[1], [0], [0], [1], [0, 0, 1, 1], [], []>} : vector<16x64xbf16>, vector<64x128xbf16>, vector<16x128xf32> -> vector<16x128xf32>
    %c0_3 = arith.constant 0 : index
    %c0_4 = arith.constant 0 : index
    %4 = vector.load %arg3[%c0_3, %c0_4] : memref<1x128xf32, #tpu.memory_space<vmem>>, vector<1x128xf32>
    %5 = vector.broadcast %4 : vector<1x128xf32> to vector<16x128xf32>
    %6 = arith.addf %3, %5 : vector<16x128xf32>
    %cst_5 = arith.constant 0.000000e+00 : f32
    %7 = vector.broadcast %cst_5 : f32 to vector<16x128xf32>
    %8 = arith.maximumf %6, %7 : vector<16x128xf32>
    %9 = arith.truncf %8 : vector<16x128xf32> to vector<16x128xbf16>
    %c0_6 = arith.constant 0 : index
    %c0_7 = arith.constant 0 : index
    %10 = vector.load %arg4[%c0_6, %c0_7] : memref<128x128xbf16, #tpu.memory_space<vmem>>, vector<128x128xbf16>
    %cst_8 = arith.constant dense<0.000000e+00> : vector<16x128xf32>
    %11 = tpu.matmul %9, %10, %cst_8 {dimension_numbers = #tpu.dot_dimension_numbers<[1], [0], [0], [1], [0, 0, 1, 1], [], []>} : vector<16x128xbf16>, vector<128x128xbf16>, vector<16x128xf32> -> vector<16x128xf32>
    %c0_9 = arith.constant 0 : index
    %c0_10 = arith.constant 0 : index
    %12 = vector.load %arg5[%c0_9, %c0_10] : memref<1x128xf32, #tpu.memory_space<vmem>>, vector<1x128xf32>
    %13 = vector.broadcast %12 : vector<1x128xf32> to vector<16x128xf32>
    %14 = arith.addf %11, %13 : vector<16x128xf32>
    %cst_11 = arith.constant dense<0xFF800000> : vector<16xf32>
    %15 = vector.multi_reduction <maximumf>, %14, %cst_11 [1] : vector<16x128xf32> to vector<16xf32>
    %16 = vector.shape_cast %15 : vector<16xf32> to vector<16x1xf32>
    %17 = vector.broadcast %16 : vector<16x1xf32> to vector<16x128xf32>
    %18 = arith.subf %14, %17 : vector<16x128xf32>
    %19 = math.exp %18 : vector<16x128xf32>
    %cst_12 = arith.constant dense<0.000000e+00> : vector<16xf32>
    %20 = vector.multi_reduction <add>, %19, %cst_12 [1] : vector<16x128xf32> to vector<16xf32>
    %21 = vector.shape_cast %20 : vector<16xf32> to vector<16x1xf32>
    %22 = vector.broadcast %21 : vector<16x1xf32> to vector<16x128xf32>
    %23 = arith.divf %19, %22 : vector<16x128xf32>
    %24 = vector.extract_strided_slice %23 {offsets = [0, 0], sizes = [16, 10], strides = [1, 1]} : vector<16x128xf32> to vector<16x10xf32>
    %c0_13 = arith.constant 0 : index
    %c0_14 = arith.constant 0 : index
    %25 = vector.load %arg6[%c0_13, %c0_14] : memref<16x10xf32, #tpu.memory_space<vmem>>, vector<16x10xf32>
    tpu.vector_store %arg6[%c0_13, %c0_14], %24 {strides = array<i32>} : memref<16x10xf32, #tpu.memory_space<vmem>>, vector<16x10xf32>,
    return
  }
  func.func @transform_0(%arg0: i32) -> (i32, i32) {
    %c0_i32 = arith.constant 0 : i32
    %c0_i32_0 = arith.constant 0 : i32
    return %arg0, %c0_i32 : i32, i32
  }
  func.func @transform_1(%arg0: i32) -> (i32, i32) {
    %c0_i32 = arith.constant 0 : i32
    %c0_i32_0 = arith.constant 0 : i32
    %c0_i32_1 = arith.constant 0 : i32
    return %c0_i32, %c0_i32_0 : i32, i32
  }
  func.func @transform_2(%arg0: i32) -> (i32, i32) {
    %c0_i32 = arith.constant 0 : i32
    %c0_i32_0 = arith.constant 0 : i32
    %c0_i32_1 = arith.constant 0 : i32
    return %c0_i32, %c0_i32_0 : i32, i32
  }
  func.func @transform_3(%arg0: i32) -> (i32, i32) {
    %c0_i32 = arith.constant 0 : i32
    %c0_i32_0 = arith.constant 0 : i32
    %c0_i32_1 = arith.constant 0 : i32
    return %c0_i32, %c0_i32_0 : i32, i32
  }
  func.func @transform_4(%arg0: i32) -> (i32, i32) {
    %c0_i32 = arith.constant 0 : i32
    %c0_i32_0 = arith.constant 0 : i32
    %c0_i32_1 = arith.constant 0 : i32
    return %c0_i32, %c0_i32_0 : i32, i32
  }
  func.func @transform_5(%arg0: i32) -> (i32, i32) {
    %c0_i32 = arith.constant 0 : i32
    %c0_i32_0 = arith.constant 0 : i32
    return %arg0, %c0_i32 : i32, i32
  }
}

</mosaic_0001>

<llo_original>
// kernel: clustering_head_forward.1
$region0: #{clustering_head_forward.1}
  #allocation0 [shape = 'u32[]', space=smem, size = 0x4, offset = 0x4, fixed_abs, tag = 'smem constant byte address 0x4 - core index']
  #allocation1 [shape = 'u32[72,128]{1,0:T(1,128)}', space=vmem, size = 0x9000, scoped, tag = 'internal scratch']
  %s0 = inlined_call_operand.hbm [shape: f32[2,64], index: 0, kind: input, shape index: {}]
  %s1 = inlined_call_operand.hbm [shape: bf16[64,128], index: 1, kind: input, shape index: {}]
  %s2 = inlined_call_operand.hbm [shape: f32[1,128], index: 2, kind: input, shape index: {}]
  %s3 = inlined_call_operand.hbm [shape: bf16[128,128], index: 3, kind: input, shape index: {}]
  %s4 = inlined_call_operand.vmem [shape: f32[1,128], index: 4, kind: input, shape index: {}]
  %s5 = inlined_call_operand.hbm [shape: f32[2,10], index: 5, kind: output, shape index: {}]
  %s6 = sld [smem:[#allocation0]]
  $region46: #{clustering_head_forward.1} parent=0
    _
  %s8 = ssub.s32 1, %s6
  %s9 = scalar_select 0, %s8, %s6
  $region1: #{clustering_head_forward.1} parent=0
    #allocation2 [shape = 'u8[8192]{0}', space=vmem, size = 0x2000, scoped, tag = 'input window, operand 0, single buffered']
    #allocation3 [shape = 's32[1]{0}', space=sflag, size = 0x4, scoped, tag = 'scoped memory for clustering_head_forward.1']
    #allocation4 [shape = 's32[1]{0}', space=sflag, size = 0x4, scoped, tag = 'scoped memory for clustering_head_forward.1']
    #allocation5 [shape = 'u8[16384]{0}', space=vmem, size = 0x4000, scoped, tag = 'input window, operand 1, single buffered']
    #allocation6 [shape = 's32[1]{0}', space=sflag, size = 0x4, scoped, tag = 'scoped memory for clustering_head_forward.1']
    #allocation7 [shape = 'u8[512]{0}', space=vmem, size = 0x400, scoped, tag = 'input window, operand 2, single buffered']
    #allocation8 [shape = 'u8[32768]{0}', space=vmem, size = 0x8000, scoped, tag = 'input window, operand 3, single buffered']
    #allocation9 [shape = 's32[1]{0}', space=sflag, size = 0x4, scoped, tag = 'scoped memory for clustering_head_forward.1']
    #allocation10 [shape = 'u8[8192]{0}', space=vmem, size = 0x2000, scoped, tag = 'output window, operand 0, single buffered']
    %10 = vsyncpa [#allocation3], 0
    %11 = vsyncpa [#allocation6], 0
    %12 = vsyncpa [#allocation9], 0
    %13 = vsyncpa [#allocation4], 0
    // Predicated region
    $region2: #{clustering_head_forward.1} parent=1 // pred_check
      _
    $region3: #{clustering_head_forward.1} parent=1 // pred_check_branch
      %15 = sbr.rel (0) target = $region5
    $region4: #{clustering_head_forward.1} parent=1 // pred_region
      %17 = vsyncadd [#allocation3], 224
      %s18 = sshll.u32 %s0, 4
      %s19 = int_to_ptr.hbm [resolvable:$true] %s18
      %s20 = sshll.u32 [#allocation2], 4
      %s21 = int_to_ptr.vmem [resolvable:$true] %s20
      %26 = dma.hbm_to_vmem [thread:$0]  %s19, 32, %s21, [#allocation3], 32, 32, 2
    $region5: #{clustering_head_forward.1} parent=1 // pred_fallthru
      _
    // Predicated region
    $region6: #{clustering_head_forward.1} parent=1 // pred_check
      _
    $region7: #{clustering_head_forward.1} parent=1 // pred_check_branch
      %28 = sbr.rel (0) target = $region9
    $region8: #{clustering_head_forward.1} parent=1 // pred_region
      %30 = vsyncadd [#allocation6], 0
      %s31 = sshll.u32 %s1, 4
      %s32 = int_to_ptr.hbm [resolvable:$true] %s31
      %s33 = sshll.u32 [#allocation5], 4
      %s34 = int_to_ptr.vmem [resolvable:$true] %s33
      %39 = dma.hbm_to_vmem [thread:$0]  %s32, 512, %s34, [#allocation6], 64, 64, 4
    $region9: #{clustering_head_forward.1} parent=1 // pred_fallthru
      _
    // Predicated region
    $region10: #{clustering_head_forward.1} parent=1 // pred_check
      _
    $region11: #{clustering_head_forward.1} parent=1 // pred_check_branch
      %41 = sbr.rel (0) target = $region13
    $region12: #{clustering_head_forward.1} parent=1 // pred_region
      %43 = vsyncadd [#allocation6], 0
      %s45 = sshll.u32 %s2, 4
      %s46 = int_to_ptr.hbm [resolvable:$true] %s45
      %s47 = sshll.u32 [#allocation7], 4
      %s48 = int_to_ptr.vmem [resolvable:$true] %s47
      %50 = dma.hbm_to_vmem [thread:$0]  %s46, 16, %s48, [#allocation6]
    $region13: #{clustering_head_forward.1} parent=1 // pred_fallthru
      _
    // Predicated region
    $region14: #{clustering_head_forward.1} parent=1 // pred_check
      _
    $region15: #{clustering_head_forward.1} parent=1 // pred_check_branch
      %52 = sbr.rel (0) target = $region17
    $region16: #{clustering_head_forward.1} parent=1 // pred_region
      %54 = vsyncadd [#allocation9], 0
      %s55 = sshll.u32 %s3, 4
      %s56 = int_to_ptr.hbm [resolvable:$true] %s55
      %s57 = sshll.u32 [#allocation8], 4
      %s58 = int_to_ptr.vmem [resolvable:$true] %s57
      %63 = dma.hbm_to_vmem [thread:$0]  %s56, 1024, %s58, [#allocation9], 64, 64, 4
    $region17: #{clustering_head_forward.1} parent=1 // pred_fallthru
      _
    // Predicated region
    $region18: #{clustering_head_forward.1} parent=1 // pred_check
      _
    $region19: #{clustering_head_forward.1} parent=1 // pred_check_branch
      %65 = sbr.rel (0) target = $region21
    $region20: #{clustering_head_forward.1} parent=1 // pred_region
      _
    $region21: #{clustering_head_forward.1} parent=1 // pred_fallthru
      _
    // Predicated region
    $region22: #{clustering_head_forward.1} parent=1 // pred_check
      _
    $region23: #{clustering_head_forward.1} parent=1 // pred_check_branch
      %67 = sbr.rel (0) target = $region25
    $region24: #{clustering_head_forward.1} parent=1 // pred_region
      %69 = dma.done [#allocation3], 256
    $region25: #{clustering_head_forward.1} parent=1 // pred_fallthru
      _
    // Predicated region
    $region26: #{clustering_head_forward.1} parent=1 // pred_check
      _
    $region27: #{clustering_head_forward.1} parent=1 // pred_check_branch
      %71 = sbr.rel (0) target = $region29
    $region28: #{clustering_head_forward.1} parent=1 // pred_region
      %73 = dma.done [#allocation6], 512
    $region29: #{clustering_head_forward.1} parent=1 // pred_fallthru
      _
    // Predicated region
    $region30: #{clustering_head_forward.1} parent=1 // pred_check
      _
    $region31: #{clustering_head_forward.1} parent=1 // pred_check_branch
      %75 = sbr.rel (0) target = $region33
    $region32: #{clustering_head_forward.1} parent=1 // pred_region
      %77 = dma.done [#allocation6], 16
    $region33: #{clustering_head_forward.1} parent=1 // pred_fallthru
      _
    // Predicated region
    $region34: #{clustering_head_forward.1} parent=1 // pred_check
      _
    $region35: #{clustering_head_forward.1} parent=1 // pred_check_branch
      %79 = sbr.rel (0) target = $region37
    $region36: #{clustering_head_forward.1} parent=1 // pred_region
      %81 = dma.done [#allocation9], 1024
    $region37: #{clustering_head_forward.1} parent=1 // pred_fallthru
      _
    %v83 = vld [vmem:[#allocation2] sm:$0xff]
    %v84 = vld [vmem:[#allocation2 + $0x8] sm:$0xff]
    %v85 = vpack.c.bf16 %v84, %v83
    %v86 = vld [vmem:[#allocation5] sm:$0xf]
    %v87 = vld [vmem:[#allocation5 + $0x4] sm:$0xf]
    %v88 = vld [vmem:[#allocation5 + $0x8] sm:$0xf]
    %v89 = vld [vmem:[#allocation5 + $0xc] sm:$0xf]
    %v90 = vld [vmem:[#allocation5 + $0x10] sm:$0xf]
    %v91 = vld [vmem:[#allocation5 + $0x14] sm:$0xf]
    %v92 = vld [vmem:[#allocation5 + $0x18] sm:$0xf]
    %v93 = vld [vmem:[#allocation5 + $0x1c] sm:$0xf]
    %v94 = vld [vmem:[#allocation7] sm:$0x1]
    %v96 = vperm.slane %v94, 0
    %v106 = vunpack.c.l.b16 %v86
    %v107 = vunpack.c.l.b16 %v87
    %v108 = vunpack.c.l.b16 %v88
    %v109 = vunpack.c.l.b16 %v89
    %v110 = vunpack.c.l.b16 %v90
    %v111 = vunpack.c.l.b16 %v91
    %v112 = vunpack.c.l.b16 %v92
    %v113 = vunpack.c.l.b16 %v93
    %v114 = vpack.c.b16 %v107, %v106
    %v115 = vpack.c.b16 %v109, %v108
    %v116 = vpack.c.b16 %v111, %v110
    %v117 = vpack.c.b16 %v113, %v112
    %vm122 = vcmask 523264
    %v124 = vsel %vm122, %v85, 0
    %126 = vmatpush.bf16.msra.mxu0 0
    %127 = vmatpush.bf16.msra.mxu0 0
    %128 = vmatpush.bf16.msra.mxu0 0
    %129 = vmatpush.bf16.msra.mxu0 0
    %130 = vmatpush.bf16.msra.mxu0 %v117
    %131 = vmatpush.bf16.msra.mxu0 %v116
    %132 = vmatpush.bf16.msra.mxu0 %v115
    %133 = vmatpush.bf16.msra.mxu0 %v114
    %134 = vmatmul.bf16.gmra.mxu0 %v124
    %v135 = vpop.f32.mrf.mxu0
    %v136 = vadd.f32 %v96, %v135
    %v137 = vpop.f32.mrf.mxu0
    %v138 = vadd.f32 %v96, %v137
    %139 = vdwg.mxu0
    %v140 = vmax.f32 %v136, 0.0
    %v141 = vmax.f32 %v138, 0.0
    %v142 = vpack.c.bf16 %v141, %v140
    %v143 = vld [vmem:[#allocation8] sm:$0xf]
    %v144 = vld [vmem:[#allocation8 + $0x4] sm:$0xf]
    %v145 = vld [vmem:[#allocation8 + $0x8] sm:$0xf]
    %v146 = vld [vmem:[#allocation8 + $0xc] sm:$0xf]
    %v147 = vld [vmem:[#allocation8 + $0x10] sm:$0xf]
    %v148 = vld [vmem:[#allocation8 + $0x14] sm:$0xf]
    %v149 = vld [vmem:[#allocation8 + $0x18] sm:$0xf]
    %v150 = vld [vmem:[#allocation8 + $0x1c] sm:$0xf]
    %v151 = vld [vmem:[#allocation8 + $0x20] sm:$0xf]
    %v152 = vld [vmem:[#allocation8 + $0x24] sm:$0xf]
    %v153 = vld [vmem:[#allocation8 + $0x28] sm:$0xf]
    %v154 = vld [vmem:[#allocation8 + $0x2c] sm:$0xf]
    %v155 = vld [vmem:[#allocation8 + $0x30] sm:$0xf]
    %v156 = vld [vmem:[#allocation8 + $0x34] sm:$0xf]
    %v157 = vld [vmem:[#allocation8 + $0x38] sm:$0xf]
    %v158 = vld [vmem:[#allocation8 + $0x3c] sm:$0xf]
    %v159 = vld [vmem:[%s4] sm:$0x1]
    %v161 = vperm.slane %v159, 0
    %v179 = vunpack.c.l.b16 %v143
    %v180 = vunpack.c.l.b16 %v144
    %v181 = vunpack.c.l.b16 %v145
    %v182 = vunpack.c.l.b16 %v146
    %v183 = vunpack.c.l.b16 %v147
    %v184 = vunpack.c.l.b16 %v148
    %v185 = vunpack.c.l.b16 %v149
    %v186 = vunpack.c.l.b16 %v150
    %v187 = vunpack.c.l.b16 %v151
    %v188 = vunpack.c.l.b16 %v152
    %v189 = vunpack.c.l.b16 %v153
    %v190 = vunpack.c.l.b16 %v154
    %v191 = vunpack.c.l.b16 %v155
    %v192 = vunpack.c.l.b16 %v156
    %v193 = vunpack.c.l.b16 %v157
    %v194 = vunpack.c.l.b16 %v158
    %v195 = vpack.c.b16 %v180, %v179
    %v196 = vpack.c.b16 %v182, %v181
    %v197 = vpack.c.b16 %v184, %v183
    %v198 = vpack.c.b16 %v186, %v185
    %v199 = vpack.c.b16 %v188, %v187
    %v200 = vpack.c.b16 %v190, %v189
    %v201 = vpack.c.b16 %v192, %v191
    %v202 = vpack.c.b16 %v194, %v193
    %211 = vmatpush.bf16.msra.mxu0 %v202
    %212 = vmatpush.bf16.msra.mxu0 %v201
    %213 = vmatpush.bf16.msra.mxu0 %v200
    %214 = vmatpush.bf16.msra.mxu0 %v199
    %215 = vmatpush.bf16.msra.mxu0 %v198
    %216 = vmatpush.bf16.msra.mxu0 %v197
    %217 = vmatpush.bf16.msra.mxu0 %v196
    %218 = vmatpush.bf16.msra.mxu0 %v195
    %219 = vmatmul.bf16.gmra.mxu0 %v142
    %v220 = vpop.f32.mrf.mxu0
    %v221 = vadd.f32 %v161, %v220
    %v222 = vpop.f32.mrf.mxu0
    %v223 = vadd.f32 %v161, %v222
    %224 = vdwg.mxu0
    %225 = vmax.xlane.f32.xlu0 %v221
    %v226 = vpop.xlane.xlu0 %225
    %227 = vmax.xlane.f32.xlu0 %v223
    %v228 = vpop.xlane.xlu0 %227
    %v229 = vsub.f32 %v221, %v226
    %v230 = vsub.f32 %v223, %v228
    %v231 = vmul.f32 %v229, 1.442695
    %v232 = vpow.pop %v231
    %v233 = vmul.f32 %v230, 1.442695
    %v234 = vpow.pop %v233
    %235 = vadd.xlane.f32.xlu0 %v232
    %v236 = vpop.xlane.xlu0 %235
    %237 = vadd.xlane.f32.xlu0 %v234
    %v238 = vpop.xlane.xlu0 %237
    %v239 = vrcp.pop %v236
    %v240 = vmul.f32 %v236, %v239
    %v241 = vsub.f32 1.0, %v240
    %v242 = vmul.f32 %v239, %v241
    %v243 = vadd.f32 %v239, %v242
    %vm244 = vweird.f32 %v236
    %vm245 = vweird.f32 %v239
    %vm246 = vmor %vm244, %vm245
    %v247 = vsel %vm246, %v239, %v243
    %v248 = vand.u32 2147483647, %v236
    %vm249 = vcmp.eq.f32.partialorder %v248, 8.507059e+37
    %v250 = vand.u32 %v236, 2147483648
    %v251 = vor.u32 1.1754944e-38, %v250
    %v252 = vsel %vm249, %v251, %v247
    %v253 = vmul.f32 %v232, %v252
    %v254 = vrcp.pop %v238
    %v255 = vmul.f32 %v238, %v254
    %v256 = vsub.f32 1.0, %v255
    %v257 = vmul.f32 %v254, %v256
    %v258 = vadd.f32 %v254, %v257
    %vm259 = vweird.f32 %v238
    %vm260 = vweird.f32 %v254
    %vm261 = vmor %vm259, %vm260
    %v262 = vsel %vm261, %v254, %v258
    %v263 = vand.u32 2147483647, %v238
    %vm264 = vcmp.eq.f32.partialorder %v263, 8.507059e+37
    %v265 = vand.u32 %v238, 2147483648
    %v266 = vor.u32 1.1754944e-38, %v265
    %v267 = vsel %vm264, %v266, %v262
    %v268 = vmul.f32 %v234, %v267
    %vm269 = vcmask 80896
    %270 = vst.msk [vmem:[#allocation10] sm:$0xff] %vm269, %v253
    %271 = vst.msk [vmem:[#allocation10 + $0x8] sm:$0xff] %vm269, %v268
    // Predicated region
    $region38: #{clustering_head_forward.1} parent=1 // pred_check
      _
    $region39: #{clustering_head_forward.1} parent=1 // pred_check_branch
      %273 = sbr.rel (0) target = $region41
    $region40: #{clustering_head_forward.1} parent=1 // pred_region
      %275 = vsyncadd [#allocation4], 224
      %s276 = sshll.u32 [#allocation10], 4
      %s277 = int_to_ptr.vmem [resolvable:$true] %s276
      %s278 = sshll.u32 %s5, 4
      %s279 = int_to_ptr.hbm [resolvable:$true] %s278
      %284 = dma.vmem_to_hbm [thread:$0]  %s277, 32, %s279, [#allocation4], 32, 32, 2
    $region41: #{clustering_head_forward.1} parent=1 // pred_fallthru
      _
    // Predicated region
    $region42: #{clustering_head_forward.1} parent=1 // pred_check
      _
    $region43: #{clustering_head_forward.1} parent=1 // pred_check_branch
      %286 = sbr.rel (0) target = $region45
    $region44: #{clustering_head_forward.1} parent=1 // pred_region
      %288 = dma.done [#allocation4], 256
    $region45: #{clustering_head_forward.1} parent=1 // pred_fallthru
      _
    %289 = vsyncpa [#allocation3], 1
    %290 = vsyncpa [#allocation6], 1
    %291 = vsyncpa [#allocation9], 1
    %292 = vsyncpa [#allocation4], 1

</llo_original>
